<compile_context>
chip_gen: v5e
topology: v5e:2x2
jax: 0.10.0
libtpu: 0.0.40
codegen_flags: <defaults>
</compile_context>

<pallas_src>
import math

import jax
import jax.numpy as jnp
from jax.experimental import pallas as pl
from jax.experimental.pallas import tpu as pltpu

LANE = 128          # TPU lane width: hidden feature dims are padded to this.
TB_MAX = 512        # max batch rows per grid step (mem-bound sweet spot).
RESIDENT_VMEM_BUDGET = 24 << 20  # headroom under v7x's 32 MiB default scoped VMEM.


def _round_up(x: int, m: int) -> int:
    return ((x + m - 1) // m) * m


def _pick_batch_tile(B: int) -> int:
    """Batch tile: big (up to 512 rows) but with >=2 grid steps when possible
    so dimension_semantics=("parallel",) can split the batch across v7x's 2 TCs."""
    if B <= 8:
        return B  # single tiny step; full-dim block needs no 8-row rounding
    half = _round_up(pl.cdiv(B, 2), 8)
    return min(half, TB_MAX)


def mlp_kernel(x_ref, w1_ref, b1_ref, w2_ref, b2_ref, w3_ref, b3_ref, o_ref):
    # x_ref: (tb, n_input) -- the singleton dim-1 of `state` was squeezed by the
    # BlockSpec (pl.Squeezed()); the torch `.float()` cast happens here, once.
    x = x_ref[...].astype(jnp.float32)

    # Layer 1: f32 operands, f32 MXU accumulation; bias add / ReLU on the VPU.
    h1 = jnp.dot(x, w1_ref[...], preferred_element_type=jnp.float32)
    h1 = jnp.maximum(h1 + b1_ref[...], 0.0)

    # Layer 2
    h2 = jnp.dot(h1, w2_ref[...], preferred_element_type=jnp.float32)
    h2 = jnp.maximum(h2 + b2_ref[...], 0.0)

    # Layer 3: output is written UNPADDED -> no padded-f32 HBM write amplification.
    o_ref[...] = (jnp.dot(h2, w3_ref[...], preferred_element_type=jnp.float32)
                  + b3_ref[...]).astype(o_ref.dtype)


def network_forward(state, params, n_output):
    """state: [B, 1, n_input] (any float dtype). Returns [B, n_output] float32."""
    w1, b1, w2, b2, w3, b3 = params
    B = state.shape[0]
    n_input = state.shape[-1]
    f_pad = w1.shape[1]   # padded hidden width (multiple of 128)

    tb = _pick_batch_tile(B)
    grid = (pl.cdiv(B, tb),)
    # NOTE: if B is not a multiple of tb, the last grid step reads a few
    # out-of-bounds input rows (garbage, possibly NaN/Inf).  They are computed
    # but never written back (Pallas masks the boundary output block), so the
    # result is still correct.

    # VMEM budget guard for the resident-weight scheme (default double-buffering
    # on every BlockSpec).  v7x (64 MiB physical) breaks first at large n_features.
    itemsize = 4
    weight_bytes = sum(int(a.size) * itemsize for a in (w1, b1, w2, b2, w3, b3))
    stream_bytes = tb * (n_input + n_output) * itemsize
    vmem_est = 2 * weight_bytes + 2 * stream_bytes
    if vmem_est > RESIDENT_VMEM_BUDGET:
        # TODO(synk): switch to a (batch, N, K)-tiled grid with a VMEM accumulator
        # scratch (reduction axis "arbitrary") instead of failing.
        raise ValueError(
            f"resident weights need ~{vmem_est} B VMEM; exceeds budget "
            f"{RESIDENT_VMEM_BUDGET} B -- tiled fallback not implemented")
    vmem_limit = min(max(vmem_est + (8 << 20), 16 << 20), 48 << 20)

    def resident(shape):
        # Constant index_map -> block DMA'd once, stays VMEM-resident across steps.
        return pl.BlockSpec(shape, lambda i: tuple(0 for _ in shape))

    return pl.pallas_call(
        mlp_kernel,
        out_shape=jax.ShapeDtypeStruct((B, n_output), jnp.float32),
        grid=grid,
        in_specs=[
            # state: squeeze the singleton middle dim inside the BlockSpec.
            pl.BlockSpec((tb, pl.Squeezed(), n_input), lambda i: (i, 0, 0)),
            resident((n_input, f_pad)),    # w1
            resident((1, f_pad)),          # b1
            resident((f_pad, f_pad)),      # w2
            resident((1, f_pad)),          # b2
            resident((f_pad, n_output)),   # w3 (output dim unpadded)
            resident((1, n_output)),       # b3
        ],
        out_specs=pl.BlockSpec((tb, n_output), lambda i: (i, 0)),
        compiler_params=pltpu.CompilerParams(
            dimension_semantics=("parallel",),   # batch axis over v7x's 2 TCs
            vmem_limit_bytes=vmem_limit,
        ),
    )(state, w1, b1, w2, b2, w3, b3)


def xavier_uniform_t(key, fan_in, fan_out, gain, pad_in, pad_out):
    # torch.nn.init.xavier_uniform_ on a (fan_out, fan_in) weight; stored here
    # transposed as (fan_in, fan_out) so the kernel computes x @ W + b directly,
    # zero-padded to the lane-aligned stored shape, kept in f32 (module fidelity).
    bound = gain * math.sqrt(6.0 / (fan_in + fan_out))
    w = jax.random.uniform(key, (fan_in, fan_out), jnp.float32,
                           minval=-bound, maxval=bound)
    return jnp.pad(w, ((0, pad_in - fan_in), (0, pad_out - fan_out)))


def torch_linear_bias(key, fan_in, fan_out, pad_out):
    # PyTorch default Linear bias init: U(-1/sqrt(fan_in), 1/sqrt(fan_in)).
    bound = 1.0 / math.sqrt(fan_in)
    b = jax.random.uniform(key, (1, fan_out), jnp.float32,
                           minval=-bound, maxval=bound)
    return jnp.pad(b, ((0, 0), (0, pad_out - fan_out)))


def init_params(key, n_input, n_features, n_output):
    ks = jax.random.split(key, 6)
    relu_gain = math.sqrt(2.0)   # calculate_gain('relu')
    lin_gain = 1.0               # calculate_gain('linear')
    # Hidden width padded to 128 lanes (zero padding keeps padded channels exactly
    # zero through ReLU).  Output width is deliberately NOT padded.
    f_pad = _round_up(n_features, LANE)

    w1 = xavier_uniform_t(ks[0], n_input, n_features, relu_gain, n_input, f_pad)
    b1 = torch_linear_bias(ks[1], n_input, n_features, f_pad)
    w2 = xavier_uniform_t(ks[2], n_features, n_features, relu_gain, f_pad, f_pad)
    b2 = torch_linear_bias(ks[3], n_features, n_features, f_pad)
    w3 = xavier_uniform_t(ks[4], n_features, n_output, lin_gain, f_pad, n_output)
    b3 = torch_linear_bias(ks[5], n_features, n_output, n_output)
    return (w1, b1, w2, b2, w3, b3)


if __name__ == "__main__":
    # Small shapes consistent with the module: input_shape=(1, 16),
    # output_shape=(4,), n_features=32, batch=8.
    batch, n_input, n_features, n_output = 8, 16, 32, 4

    key = jax.random.PRNGKey(0)
    k_params, k_state = jax.random.split(key)
    params = init_params(k_params, n_input, n_features, n_output)

    # state has a singleton dim 1 (squeezed in forward), like the torch module.
    state = jax.random.normal(k_state, (batch, 1, n_input), dtype=jnp.float32)

    out = jax.block_until_ready(network_forward(state, params, n_output))

    # Plain-JAX f32 reference (HIGHEST precision).  Tolerance allows for the
    # TPU MXU's default matmul precision inside the kernel.
    w1, b1, w2, b2, w3, b3 = params
    hp = jax.lax.Precision.HIGHEST
    x = jnp.squeeze(state, 1).astype(jnp.float32)
    h1 = jnp.maximum(jnp.dot(x, w1, precision=hp) + b1, 0.0)
    h2 = jnp.maximum(jnp.dot(h1, w2, precision=hp) + b2, 0.0)
    ref = jnp.dot(h2, w3, precision=hp) + b3

    assert out.shape == (batch, n_output)
    err = float(jnp.max(jnp.abs(out - ref)))
    assert jnp.allclose(out, ref, atol=2e-2, rtol=2e-2), f"max abs err {err}"

    print("KERNEL_OK")
</pallas_src>

<mosaic_0001>
module attributes {stable_mosaic.version = 11 : i64} {
  func.func @mlp_kernel(%arg0: i32, %arg1: memref<8x1x16xf32, #tpu.memory_space<vmem>>, %arg2: memref<16x128xf32, #tpu.memory_space<vmem>>, %arg3: memref<1x128xf32, #tpu.memory_space<vmem>>, %arg4: memref<128x128xf32, #tpu.memory_space<vmem>>, %arg5: memref<1x128xf32, #tpu.memory_space<vmem>>, %arg6: memref<128x4xf32, #tpu.memory_space<vmem>>, %arg7: memref<1x4xf32, #tpu.memory_space<vmem>>, %arg8: memref<8x4xf32, #tpu.memory_space<vmem>>) attributes {dimension_semantics = [#tpu.dimension_semantics<parallel>], iteration_bounds = array<i64: 1>, scalar_prefetch = 0 : i64, scratch_operands = 0 : i64, tpu.core_type = #tpu.core_type<tc>, window_params = [{transform_indices = @transform_0, window_bounds = array<i64: 8, 1, 16>}, {pipeline_mode = #tpu.pipeline_mode<synchronous>, transform_indices = @transform_1, window_bounds = array<i64: 16, 128>}, {pipeline_mode = #tpu.pipeline_mode<synchronous>, transform_indices = @transform_2, window_bounds = array<i64: 1, 128>}, {pipeline_mode = #tpu.pipeline_mode<synchronous>, transform_indices = @transform_3, window_bounds = array<i64: 128, 128>}, {pipeline_mode = #tpu.pipeline_mode<synchronous>, transform_indices = @transform_4, window_bounds = array<i64: 1, 128>}, {pipeline_mode = #tpu.pipeline_mode<synchronous>, transform_indices = @transform_5, window_bounds = array<i64: 128, 4>}, {pipeline_mode = #tpu.pipeline_mode<synchronous>, transform_indices = @transform_6, window_bounds = array<i64: 1, 4>}, {transform_indices = @transform_7, window_bounds = array<i64: 8, 4>}]} {
    %c0 = arith.constant 0 : index
    %c0_0 = arith.constant 0 : index
    %c0_1 = arith.constant 0 : index
    %0 = vector.load %arg1[%c0, %c0_0, %c0_1] : memref<8x1x16xf32, #tpu.memory_space<vmem>>, vector<8x1x16xf32>
    %1 = vector.shape_cast %0 : vector<8x1x16xf32> to vector<8x16xf32>
    %c0_2 = arith.constant 0 : index
    %c0_3 = arith.constant 0 : index
    %2 = vector.load %arg2[%c0_2, %c0_3] : memref<16x128xf32, #tpu.memory_space<vmem>>, vector<16x128xf32>
    %cst = arith.constant dense<0.000000e+00> : vector<8x128xf32>
    %3 = tpu.matmul %1, %2, %cst {dimension_numbers = #tpu.dot_dimension_numbers<[1], [0], [0], [1], [0, 0, 1, 1], [], []>} : vector<8x16xf32>, vector<16x128xf32>, vector<8x128xf32> -> vector<8x128xf32>
    %c0_4 = arith.constant 0 : index
    %c0_5 = arith.constant 0 : index
    %4 = vector.load %arg3[%c0_4, %c0_5] : memref<1x128xf32, #tpu.memory_space<vmem>>, vector<1x128xf32>
    %5 = vector.broadcast %4 : vector<1x128xf32> to vector<8x128xf32>
    %6 = arith.addf %3, %5 : vector<8x128xf32>
    %cst_6 = arith.constant 0.000000e+00 : f32
    %7 = vector.broadcast %cst_6 : f32 to vector<8x128xf32>
    %8 = arith.maximumf %6, %7 : vector<8x128xf32>
    %c0_7 = arith.constant 0 : index
    %c0_8 = arith.constant 0 : index
    %9 = vector.load %arg4[%c0_7, %c0_8] : memref<128x128xf32, #tpu.memory_space<vmem>>, vector<128x128xf32>
    %cst_9 = arith.constant dense<0.000000e+00> : vector<8x128xf32>
    %10 = tpu.matmul %8, %9, %cst_9 {dimension_numbers = #tpu.dot_dimension_numbers<[1], [0], [0], [1], [0, 0, 1, 1], [], []>} : vector<8x128xf32>, vector<128x128xf32>, vector<8x128xf32> -> vector<8x128xf32>
    %c0_10 = arith.constant 0 : index
    %c0_11 = arith.constant 0 : index
    %11 = vector.load %arg5[%c0_10, %c0_11] : memref<1x128xf32, #tpu.memory_space<vmem>>, vector<1x128xf32>
    %12 = vector.broadcast %11 : vector<1x128xf32> to vector<8x128xf32>
    %13 = arith.addf %10, %12 : vector<8x128xf32>
    %cst_12 = arith.constant 0.000000e+00 : f32
    %14 = vector.broadcast %cst_12 : f32 to vector<8x128xf32>
    %15 = arith.maximumf %13, %14 : vector<8x128xf32>
    %c0_13 = arith.constant 0 : index
    %c0_14 = arith.constant 0 : index
    %16 = vector.load %arg6[%c0_13, %c0_14] : memref<128x4xf32, #tpu.memory_space<vmem>>, vector<128x4xf32>
    %cst_15 = arith.constant dense<0.000000e+00> : vector<8x4xf32>
    %17 = tpu.matmul %15, %16, %cst_15 {dimension_numbers = #tpu.dot_dimension_numbers<[1], [0], [0], [1], [0, 0, 1, 1], [], []>} : vector<8x128xf32>, vector<128x4xf32>, vector<8x4xf32> -> vector<8x4xf32>
    %c0_16 = arith.constant 0 : index
    %c0_17 = arith.constant 0 : index
    %18 = vector.load %arg7[%c0_16, %c0_17] : memref<1x4xf32, #tpu.memory_space<vmem>>, vector<1x4xf32>
    %19 = vector.broadcast %18 : vector<1x4xf32> to vector<8x4xf32>
    %20 = arith.addf %17, %19 : vector<8x4xf32>
    %c0_18 = arith.constant 0 : index
    %c0_19 = arith.constant 0 : index
    %21 = vector.load %arg8[%c0_18, %c0_19] : memref<8x4xf32, #tpu.memory_space<vmem>>, vector<8x4xf32>
    tpu.vector_store %arg8[%c0_18, %c0_19], %20 {strides = array<i32>} : memref<8x4xf32, #tpu.memory_space<vmem>>, vector<8x4xf32>,
    return
  }
  func.func @transform_0(%arg0: i32) -> (i32, i32, i32) {
    %c0_i32 = arith.constant 0 : i32
    %c0_i32_0 = arith.constant 0 : i32
    %c0_i32_1 = arith.constant 0 : i32
    return %arg0, %c0_i32, %c0_i32_0 : i32, i32, i32
  }
  func.func @transform_1(%arg0: i32) -> (i32, i32) {
    %c0_i32 = arith.constant 0 : i32
    %c0_i32_0 = arith.constant 0 : i32
    %c0_i32_1 = arith.constant 0 : i32
    return %c0_i32, %c0_i32_0 : i32, i32
  }
  func.func @transform_2(%arg0: i32) -> (i32, i32) {
    %c0_i32 = arith.constant 0 : i32
    %c0_i32_0 = arith.constant 0 : i32
    %c0_i32_1 = arith.constant 0 : i32
    return %c0_i32, %c0_i32_0 : i32, i32
  }
  func.func @transform_3(%arg0: i32) -> (i32, i32) {
    %c0_i32 = arith.constant 0 : i32
    %c0_i32_0 = arith.constant 0 : i32
    %c0_i32_1 = arith.constant 0 : i32
    return %c0_i32, %c0_i32_0 : i32, i32
  }
  func.func @transform_4(%arg0: i32) -> (i32, i32) {
    %c0_i32 = arith.constant 0 : i32
    %c0_i32_0 = arith.constant 0 : i32
    %c0_i32_1 = arith.constant 0 : i32
    return %c0_i32, %c0_i32_0 : i32, i32
  }
  func.func @transform_5(%arg0: i32) -> (i32, i32) {
    %c0_i32 = arith.constant 0 : i32
    %c0_i32_0 = arith.constant 0 : i32
    %c0_i32_1 = arith.constant 0 : i32
    return %c0_i32, %c0_i32_0 : i32, i32
  }
  func.func @transform_6(%arg0: i32) -> (i32, i32) {
    %c0_i32 = arith.constant 0 : i32
    %c0_i32_0 = arith.constant 0 : i32
    %c0_i32_1 = arith.constant 0 : i32
    return %c0_i32, %c0_i32_0 : i32, i32
  }
  func.func @transform_7(%arg0: i32) -> (i32, i32) {
    %c0_i32 = arith.constant 0 : i32
    %c0_i32_0 = arith.constant 0 : i32
    return %arg0, %c0_i32 : i32, i32
  }
}

</mosaic_0001>

<llo_original>
// kernel: tpu_custom_call.1
$region0: #{tpu_custom_call.1}
  #allocation0 [shape = 'u32[]', space=smem, size = 0x4, offset = 0x4, fixed_abs, tag = 'smem constant byte address 0x4 - core index']
  #allocation1 [shape = 'u32[72,128]{1,0:T(1,128)}', space=vmem, size = 0x9000, scoped, tag = 'internal scratch']
  %s0 = inlined_call_operand.hbm [shape: f32[8,1,16], index: 0, kind: input, shape index: {}]
  %s1 = inlined_call_operand.hbm [shape: f32[16,128], index: 1, kind: input, shape index: {}]
  %s2 = inlined_call_operand.vmem [shape: f32[1,128], index: 2, kind: input, shape index: {}]
  %s3 = inlined_call_operand.vmem [shape: f32[128,128], index: 3, kind: input, shape index: {}]
  %s4 = inlined_call_operand.vmem [shape: f32[1,128], index: 4, kind: input, shape index: {}]
  %s5 = inlined_call_operand.vmem [shape: f32[128,4], index: 5, kind: input, shape index: {}]
  %s6 = inlined_call_operand.vmem [shape: f32[1,4], index: 6, kind: input, shape index: {}]
  %s7 = inlined_call_operand.vmem [shape: f32[8,4], index: 7, kind: output, shape index: {}]
  %s8 = sld [smem:[#allocation0]]
  $region46: #{tpu_custom_call.1} parent=0
    _
  %s10 = ssub.s32 1, %s8
  %s11 = scalar_select 0, %s10, %s8
  $region1: #{tpu_custom_call.1} parent=0
    #allocation2 [shape = 'u8[4096]{0}', space=vmem, size = 0x1000, scoped, tag = 'input window, operand 0, single buffered']
    #allocation3 [shape = 's32[1]{0}', space=sflag, size = 0x4, scoped, tag = 'scoped memory for tpu_custom_call.1']
    #allocation4 [shape = 'u8[8192]{0}', space=vmem, size = 0x2000, scoped, tag = 'input window, operand 1, single buffered']
    #allocation5 [shape = 's32[1]{0}', space=sflag, size = 0x4, scoped, tag = 'scoped memory for tpu_custom_call.1']
    %12 = vsyncpa [#allocation3], 0
    %13 = vsyncpa [#allocation5], 0
    // Predicated region
    $region2: #{tpu_custom_call.1} parent=1 // pred_check
      _
    $region3: #{tpu_custom_call.1} parent=1 // pred_check_branch
      %15 = sbr.rel (0) target = $region5
    $region4: #{tpu_custom_call.1} parent=1 // pred_region
      %17 = vsyncadd [#allocation3], 0
      %s18 = sshll.u32 %s0, 4
      %s19 = int_to_ptr.hbm [resolvable:$true] %s18
      %s20 = sshll.u32 [#allocation2], 4
      %s21 = int_to_ptr.vmem [resolvable:$true] %s20
      %26 = dma.hbm_to_vmem [thread:$0]  %s19, 128, %s21, [#allocation3], 16, 16, 1
    $region5: #{tpu_custom_call.1} parent=1 // pred_fallthru
      _
    // Predicated region
    $region6: #{tpu_custom_call.1} parent=1 // pred_check
      _
    $region7: #{tpu_custom_call.1} parent=1 // pred_check_branch
      %28 = sbr.rel (0) target = $region9
    $region8: #{tpu_custom_call.1} parent=1 // pred_region
      %30 = vsyncadd [#allocation5], 0
      %s31 = sshll.u32 %s1, 4
      %s32 = int_to_ptr.hbm [resolvable:$true] %s31
      %s33 = sshll.u32 [#allocation4], 4
      %s34 = int_to_ptr.vmem [resolvable:$true] %s33
      %39 = dma.hbm_to_vmem [thread:$0]  %s32, 256, %s34, [#allocation5], 128, 128, 8
    $region9: #{tpu_custom_call.1} parent=1 // pred_fallthru
      _
    // Predicated region
    $region10: #{tpu_custom_call.1} parent=1 // pred_check
      _
    $region11: #{tpu_custom_call.1} parent=1 // pred_check_branch
      %41 = sbr.rel (0) target = $region13
    $region12: #{tpu_custom_call.1} parent=1 // pred_region
      _
    $region13: #{tpu_custom_call.1} parent=1 // pred_fallthru
      _
    // Predicated region
    $region14: #{tpu_custom_call.1} parent=1 // pred_check
      _
    $region15: #{tpu_custom_call.1} parent=1 // pred_check_branch
      %43 = sbr.rel (0) target = $region17
    $region16: #{tpu_custom_call.1} parent=1 // pred_region
      _
    $region17: #{tpu_custom_call.1} parent=1 // pred_fallthru
      _
    // Predicated region
    $region18: #{tpu_custom_call.1} parent=1 // pred_check
      _
    $region19: #{tpu_custom_call.1} parent=1 // pred_check_branch
      %45 = sbr.rel (0) target = $region21
    $region20: #{tpu_custom_call.1} parent=1 // pred_region
      _
    $region21: #{tpu_custom_call.1} parent=1 // pred_fallthru
      _
    // Predicated region
    $region22: #{tpu_custom_call.1} parent=1 // pred_check
      _
    $region23: #{tpu_custom_call.1} parent=1 // pred_check_branch
      %47 = sbr.rel (0) target = $region25
    $region24: #{tpu_custom_call.1} parent=1 // pred_region
      _
    $region25: #{tpu_custom_call.1} parent=1 // pred_fallthru
      _
    // Predicated region
    $region26: #{tpu_custom_call.1} parent=1 // pred_check
      _
    $region27: #{tpu_custom_call.1} parent=1 // pred_check_branch
      %49 = sbr.rel (0) target = $region29
    $region28: #{tpu_custom_call.1} parent=1 // pred_region
      _
    $region29: #{tpu_custom_call.1} parent=1 // pred_fallthru
      _
    // Predicated region
    $region30: #{tpu_custom_call.1} parent=1 // pred_check
      _
    $region31: #{tpu_custom_call.1} parent=1 // pred_check_branch
      %51 = sbr.rel (0) target = $region33
    $region32: #{tpu_custom_call.1} parent=1 // pred_region
      %53 = dma.done [#allocation3], 128
    $region33: #{tpu_custom_call.1} parent=1 // pred_fallthru
      _
    // Predicated region
    $region34: #{tpu_custom_call.1} parent=1 // pred_check
      _
    $region35: #{tpu_custom_call.1} parent=1 // pred_check_branch
      %55 = sbr.rel (0) target = $region37
    $region36: #{tpu_custom_call.1} parent=1 // pred_region
      %57 = dma.done [#allocation5], 256
    $region37: #{tpu_custom_call.1} parent=1 // pred_fallthru
      _
    %v58 = vld [vmem:[#allocation2] sm:$0x1]
    %v59 = vld [vmem:[#allocation2 + $0x1] sm:$0x1]
    %v60 = vld [vmem:[#allocation2 + $0x2] sm:$0x1]
    %v61 = vld [vmem:[#allocation2 + $0x3] sm:$0x1]
    %v62 = vld [vmem:[#allocation2 + $0x4] sm:$0x1]
    %v63 = vld [vmem:[#allocation2 + $0x5] sm:$0x1]
    %v64 = vld [vmem:[#allocation2 + $0x6] sm:$0x1]
    %v65 = vld [vmem:[#allocation2 + $0x7] sm:$0x1]
    %v66 = vld [vmem:[#allocation4] sm:$0xff]
    %v67 = vld [vmem:[#allocation4 + $0x8] sm:$0xff]
    %v68 = vld [vmem:[%s2] sm:$0x1]
    %v70 = vperm.slane %v68, 0
    %80 = vst [vmem:[#allocation1] ss:$9 sm:$0xff] %v58
    %s81 = scalar_lea.vmem [#allocation1], 1
    %82 = vst [vmem:[%s81] ss:$9 sm:$0xff] %v59
    %s83 = scalar_lea.vmem [#allocation1], 2
    %84 = vst [vmem:[%s83] ss:$9 sm:$0xff] %v60
    %s85 = scalar_lea.vmem [#allocation1], 3
    %86 = vst [vmem:[%s85] ss:$9 sm:$0xff] %v61
    %s87 = scalar_lea.vmem [#allocation1], 4
    %88 = vst [vmem:[%s87] ss:$9 sm:$0xff] %v62
    %s89 = scalar_lea.vmem [#allocation1], 5
    %90 = vst [vmem:[%s89] ss:$9 sm:$0xff] %v63
    %s91 = scalar_lea.vmem [#allocation1], 6
    %92 = vst [vmem:[%s91] ss:$9 sm:$0xff] %v64
    %s93 = scalar_lea.vmem [#allocation1], 7
    %94 = vst [vmem:[%s93] ss:$9 sm:$0xff] %v65
    %v95 = vld [vmem:[#allocation1] sm:$0xff]
    %vm96 = vcmask 130048
    %v97 = vsel %vm96, %v95, 0
    %99 = vmatpush.msra.mxu0 0.0
    %100 = vmatpush.msra.mxu0 0.0
    %101 = vmatpush.msra.mxu0 0.0
    %102 = vmatpush.msra.mxu0 0.0
    %103 = vmatpush.msra.mxu0 0.0
    %104 = vmatpush.msra.mxu0 0.0
    %105 = vmatpush.msra.mxu0 0.0
    %106 = vmatpush.msra.mxu0 0.0
    %107 = vmatpush.msra.mxu0 0.0
    %108 = vmatpush.msra.mxu0 0.0
    %109 = vmatpush.msra.mxu0 0.0
    %110 = vmatpush.msra.mxu0 0.0
    %111 = vmatpush.msra.mxu0 0.0
    %112 = vmatpush.msra.mxu0 0.0
    %113 = vmatpush.msra.mxu0 %v67
    %114 = vmatpush.msra.mxu0 %v66
    %115 = vmatmul.f32.gmra.mxu0 %v97
    %v116 = vpop.f32.mrf.mxu0
    %v117 = vadd.f32 %v70, %v116
    %118 = vdwg.mxu0
    %v119 = vmax.f32 %v117, 0.0
    %v120 = vld [vmem:[%s3] sm:$0xff]
    %v121 = vld [vmem:[%s3 + $0x8] sm:$0xff]
    %v122 = vld [vmem:[%s3 + $0x10] sm:$0xff]
    %v123 = vld [vmem:[%s3 + $0x18] sm:$0xff]
    %v124 = vld [vmem:[%s3 + $0x20] sm:$0xff]
    %v125 = vld [vmem:[%s3 + $0x28] sm:$0xff]
    %v126 = vld [vmem:[%s3 + $0x30] sm:$0xff]
    %v127 = vld [vmem:[%s3 + $0x38] sm:$0xff]
    %v128 = vld [vmem:[%s3 + $0x40] sm:$0xff]
    %v129 = vld [vmem:[%s3 + $0x48] sm:$0xff]
    %v130 = vld [vmem:[%s3 + $0x50] sm:$0xff]
    %v131 = vld [vmem:[%s3 + $0x58] sm:$0xff]
    %v132 = vld [vmem:[%s3 + $0x60] sm:$0xff]
    %v133 = vld [vmem:[%s3 + $0x68] sm:$0xff]
    %v134 = vld [vmem:[%s3 + $0x70] sm:$0xff]
    %v135 = vld [vmem:[%s3 + $0x78] sm:$0xff]
    %v136 = vld [vmem:[%s4] sm:$0x1]
    %v138 = vperm.slane %v136, 0
    %140 = vmatpush.msra.mxu0 %v135
    %141 = vmatpush.msra.mxu0 %v134
    %142 = vmatpush.msra.mxu0 %v133
    %143 = vmatpush.msra.mxu0 %v132
    %144 = vmatpush.msra.mxu0 %v131
    %145 = vmatpush.msra.mxu0 %v130
    %146 = vmatpush.msra.mxu0 %v129
    %147 = vmatpush.msra.mxu0 %v128
    %148 = vmatpush.msra.mxu0 %v127
    %149 = vmatpush.msra.mxu0 %v126
    %150 = vmatpush.msra.mxu0 %v125
    %151 = vmatpush.msra.mxu0 %v124
    %152 = vmatpush.msra.mxu0 %v123
    %153 = vmatpush.msra.mxu0 %v122
    %154 = vmatpush.msra.mxu0 %v121
    %155 = vmatpush.msra.mxu0 %v120
    %156 = vmatmul.f32.gmra.mxu0 %v119
    %v157 = vpop.f32.mrf.mxu0
    %v158 = vadd.f32 %v138, %v157
    %159 = vdwg.mxu0
    %v160 = vmax.f32 %v158, 0.0
    %v161 = vld [vmem:[%s5] sm:$0xff]
    %v162 = vld [vmem:[%s5 + $0x8] sm:$0xff]
    %v163 = vld [vmem:[%s5 + $0x10] sm:$0xff]
    %v164 = vld [vmem:[%s5 + $0x18] sm:$0xff]
    %v165 = vld [vmem:[%s5 + $0x20] sm:$0xff]
    %v166 = vld [vmem:[%s5 + $0x28] sm:$0xff]
    %v167 = vld [vmem:[%s5 + $0x30] sm:$0xff]
    %v168 = vld [vmem:[%s5 + $0x38] sm:$0xff]
    %v169 = vld [vmem:[%s5 + $0x40] sm:$0xff]
    %v170 = vld [vmem:[%s5 + $0x48] sm:$0xff]
    %v171 = vld [vmem:[%s5 + $0x50] sm:$0xff]
    %v172 = vld [vmem:[%s5 + $0x58] sm:$0xff]
    %v173 = vld [vmem:[%s5 + $0x60] sm:$0xff]
    %v174 = vld [vmem:[%s5 + $0x68] sm:$0xff]
    %v175 = vld [vmem:[%s5 + $0x70] sm:$0xff]
    %v176 = vld [vmem:[%s5 + $0x78] sm:$0xff]
    %v177 = vld [vmem:[%s6] sm:$0x1]
    %v179 = vperm.slane %v177, 0
    %181 = vmatpush.msra.mxu0 %v176
    %182 = vmatpush.msra.mxu0 %v175
    %183 = vmatpush.msra.mxu0 %v174
    %184 = vmatpush.msra.mxu0 %v173
    %185 = vmatpush.msra.mxu0 %v172
    %186 = vmatpush.msra.mxu0 %v171
    %187 = vmatpush.msra.mxu0 %v170
    %188 = vmatpush.msra.mxu0 %v169
    %189 = vmatpush.msra.mxu0 %v168
    %190 = vmatpush.msra.mxu0 %v167
    %191 = vmatpush.msra.mxu0 %v166
    %192 = vmatpush.msra.mxu0 %v165
    %193 = vmatpush.msra.mxu0 %v164
    %194 = vmatpush.msra.mxu0 %v163
    %195 = vmatpush.msra.mxu0 %v162
    %196 = vmatpush.msra.mxu0 %v161
    %197 = vmatmul.f32.gmra.mxu0 %v160
    %v198 = vpop.f32.mrf.mxu0
    %v199 = vadd.f32 %v179, %v198
    %200 = vdwg.mxu0
    %vm201 = vcmask 31744
    %202 = vst.msk [vmem:[%s7] sm:$0xff] %vm201, %v199
    // Predicated region
    $region38: #{tpu_custom_call.1} parent=1 // pred_check
      _
    $region39: #{tpu_custom_call.1} parent=1 // pred_check_branch
      %204 = sbr.rel (0) target = $region41
    $region40: #{tpu_custom_call.1} parent=1 // pred_region
      _
    $region41: #{tpu_custom_call.1} parent=1 // pred_fallthru
      _
    // Predicated region
    $region42: #{tpu_custom_call.1} parent=1 // pred_check
      _
    $region43: #{tpu_custom_call.1} parent=1 // pred_check_branch
      %206 = sbr.rel (0) target = $region45
    $region44: #{tpu_custom_call.1} parent=1 // pred_region
      _
    $region45: #{tpu_custom_call.1} parent=1 // pred_fallthru
      _
    %207 = vsyncpa [#allocation3], 1
    %208 = vsyncpa [#allocation5], 1

</llo_original>
